<compile_context>
chip_gen: v5e
topology: v5e:2x2
jax: 0.10.0
libtpu: 0.0.40
codegen_flags: <defaults>
</compile_context>

<pallas_src>
import functools

import jax
import jax.numpy as jnp
from jax import lax
from jax.experimental import pallas as pl
from jax.experimental.pallas import tpu as pltpu


def _round_up(n, m):
    return ((n + m - 1) // m) * m


def _cdiv(a, b):
    return -(-a // b)


def _qvaluemap_kernel(x_ref, w1_ref, w2_ref, w3_ref, b_ref, o_ref, *, chunk):
    hidden = w1_ref.shape[1]
    act = o_ref.shape[1]

    # Weights resident in VMEM across the whole grid (constant index_map).
    w1 = w1_ref[...]
    w2 = w2_ref[...]
    w3 = w3_ref[...]

    # Packed biases: row 0 -> b1, row 1 -> b2, row 2 -> b3.
    # Hoist the (1, W) -> (chunk, W) broadcasts out of the unrolled loop
    # (JAX does not CSE broadcast_in_dim).
    b1 = jnp.broadcast_to(b_ref[0:1, :hidden], (chunk, hidden))
    b2 = jnp.broadcast_to(b_ref[1:2, :hidden], (chunk, hidden))
    b3 = jnp.broadcast_to(b_ref[2:3, :act], (chunk, act))

    n_chunks = x_ref.shape[0] // chunk  # static

    def body(c, carry):
        r = pl.multiple_of(c * chunk, chunk)
        xb = x_ref[pl.ds(r, chunk), :]                              # f32 (chunk, in)

        # Layer 1: Linear + ReLU
        h = jnp.dot(xb, w1, preferred_element_type=jnp.float32) + b1
        h = jnp.maximum(h, 0.0)

        # Layer 2: Linear + ReLU
        h = jnp.dot(h, w2, preferred_element_type=jnp.float32) + b2
        h = jnp.maximum(h, 0.0)

        # Layer 3: Linear (no activation), narrow (action_nums-wide) store
        out = jnp.dot(h, w3, preferred_element_type=jnp.float32) + b3
        o_ref[pl.ds(r, chunk), :] = out.astype(o_ref.dtype)
        return carry

    lax.fori_loop(0, n_chunks, body, 0, unroll=True)


@jax.jit
def qvaluemap_forward(x, w1, b1, w2, b2, w3, b3):
    B, input_size = x.shape
    hidden = w1.shape[1]
    action_nums = w3.shape[1]

    # Batch tiling:
    #  - small batch: single tile (one grid step), chunk == tile.
    #  - large batch: tile_b=512 streamed tiles, inner chunk=256 (MXU row tile),
    #    step count rounded up to EVEN so v7x's two TensorCores split evenly.
    if B <= 256:
        tile_b = _round_up(max(B, 8), 8)
        chunk = tile_b
        b_pad = tile_b
    elif B <= 1024:
        tile_b = _round_up(B, 256)
        chunk = 256
        b_pad = tile_b
    else:
        tile_b = 512
        chunk = 256
        steps = _cdiv(B, tile_b)
        steps += steps % 2                      # even split across 2 TCs (v7x)
        b_pad = steps * tile_b

    x_p = x if b_pad == B else jnp.pad(x, ((0, b_pad - B), (0, 0)))

    # Pack the three biases into one small array (single tiny input DMA).
    bw = max(hidden, action_nums)
    b_packed = jnp.zeros((3, bw), jnp.float32)
    b_packed = b_packed.at[0, :hidden].set(b1.reshape(-1))
    b_packed = b_packed.at[1, :hidden].set(b2.reshape(-1))
    b_packed = b_packed.at[2, :action_nums].set(b3.reshape(-1))

    grid = (b_pad // tile_b,)
    kernel = functools.partial(_qvaluemap_kernel, chunk=chunk)

    out_pad = pl.pallas_call(
        kernel,
        out_shape=jax.ShapeDtypeStruct((b_pad, action_nums), jnp.float32),
        grid=grid,
        in_specs=[
            pl.BlockSpec((tile_b, input_size), lambda i: (i, 0)),    # x: streamed
            pl.BlockSpec((input_size, hidden), lambda i: (0, 0)),    # w1: resident
            pl.BlockSpec((hidden, hidden), lambda i: (0, 0)),        # w2: resident
            pl.BlockSpec((hidden, action_nums), lambda i: (0, 0)),   # w3: resident
            pl.BlockSpec((3, bw), lambda i: (0, 0)),                 # packed biases
        ],
        out_specs=pl.BlockSpec((tile_b, action_nums), lambda i: (i, 0)),
        compiler_params=pltpu.CompilerParams(
            dimension_semantics=("parallel",)),
    )(x_p, w1, w2, w3, b_packed)

    return out_pad if b_pad == B else out_pad[:B]


def init_qvaluemap_params(key, input_size, hidden_size, action_nums):
    """Deterministic init mimicking nn.Linear's U(-1/sqrt(fan_in), 1/sqrt(fan_in))."""
    def linear(k, fan_in, fan_out):
        kw, kb = jax.random.split(k)
        bound = 1.0 / jnp.sqrt(fan_in)
        # stored as [in, out] so forward is x @ W
        w = jax.random.uniform(kw, (fan_in, fan_out), jnp.float32, -bound, bound)
        b = jax.random.uniform(kb, (1, fan_out), jnp.float32, -bound, bound)
        return w, b

    k1, k2, k3 = jax.random.split(key, 3)
    w1, b1 = linear(k1, input_size, hidden_size)
    w2, b2 = linear(k2, hidden_size, hidden_size)
    w3, b3 = linear(k3, hidden_size, action_nums)
    return w1, b1, w2, b2, w3, b3


def reference_forward(x, w1, b1, w2, b2, w3, b3):
    h = jnp.maximum(x @ w1 + b1, 0.0)
    h = jnp.maximum(h @ w2 + b2, 0.0)
    return h @ w3 + b3


if __name__ == "__main__":
    input_size, hidden_size, action_nums = 16, 32, 4

    key = jax.random.PRNGKey(0)
    k_params, k_x1, k_x2 = jax.random.split(key, 3)
    params = init_qvaluemap_params(k_params, input_size, hidden_size, action_nums)

    # Small (module-sized) batch.
    batch = 8
    x = jax.random.normal(k_x1, (batch, input_size), jnp.float32)
    out = jax.block_until_ready(qvaluemap_forward(x, *params))
    ref = reference_forward(x, *params)
    assert out.shape == (batch, action_nums)
    assert jnp.allclose(out, ref, atol=3e-2, rtol=3e-2)

    # Larger, non-multiple batch to exercise the grid / padding / chunking path.
    batch_big = 4100
    x_big = jax.random.normal(k_x2, (batch_big, input_size), jnp.float32)
    out_big = jax.block_until_ready(qvaluemap_forward(x_big, *params))
    ref_big = reference_forward(x_big, *params)
    assert out_big.shape == (batch_big, action_nums)
    assert jnp.allclose(out_big, ref_big, atol=3e-2, rtol=3e-2)

    print("KERNEL_OK")
</pallas_src>

<mosaic_0001>
module attributes {stable_mosaic.version = 11 : i64} {
  func.func @_qvaluemap_kernel(%arg0: i32, %arg1: memref<8x16xf32, #tpu.memory_space<vmem>>, %arg2: memref<16x32xf32, #tpu.memory_space<vmem>>, %arg3: memref<32x32xf32, #tpu.memory_space<vmem>>, %arg4: memref<32x4xf32, #tpu.memory_space<vmem>>, %arg5: memref<3x32xf32, #tpu.memory_space<vmem>>, %arg6: memref<8x4xf32, #tpu.memory_space<vmem>>) attributes {dimension_semantics = [#tpu.dimension_semantics<parallel>], iteration_bounds = array<i64: 1>, scalar_prefetch = 0 : i64, scratch_operands = 0 : i64, tpu.core_type = #tpu.core_type<tc>, window_params = [{transform_indices = @transform_0, window_bounds = array<i64: 8, 16>}, {pipeline_mode = #tpu.pipeline_mode<synchronous>, transform_indices = @transform_1, window_bounds = array<i64: 16, 32>}, {pipeline_mode = #tpu.pipeline_mode<synchronous>, transform_indices = @transform_2, window_bounds = array<i64: 32, 32>}, {pipeline_mode = #tpu.pipeline_mode<synchronous>, transform_indices = @transform_3, window_bounds = array<i64: 32, 4>}, {pipeline_mode = #tpu.pipeline_mode<synchronous>, transform_indices = @transform_4, window_bounds = array<i64: 3, 32>}, {transform_indices = @transform_5, window_bounds = array<i64: 8, 4>}]} {
    %c0 = arith.constant 0 : index
    %c0_0 = arith.constant 0 : index
    %0 = vector.load %arg2[%c0, %c0_0] : memref<16x32xf32, #tpu.memory_space<vmem>>, vector<16x32xf32>
    %c0_1 = arith.constant 0 : index
    %c0_2 = arith.constant 0 : index
    %1 = vector.load %arg3[%c0_1, %c0_2] : memref<32x32xf32, #tpu.memory_space<vmem>>, vector<32x32xf32>
    %c0_3 = arith.constant 0 : index
    %c0_4 = arith.constant 0 : index
    %2 = vector.load %arg4[%c0_3, %c0_4] : memref<32x4xf32, #tpu.memory_space<vmem>>, vector<32x4xf32>
    %c0_5 = arith.constant 0 : index
    %c0_6 = arith.constant 0 : index
    %3 = vector.load %arg5[%c0_5, %c0_6] : memref<3x32xf32, #tpu.memory_space<vmem>>, vector<1x32xf32>
    %4 = vector.shape_cast %3 : vector<1x32xf32> to vector<1x32xf32>
    %5 = vector.broadcast %4 : vector<1x32xf32> to vector<8x32xf32>
    %c1 = arith.constant 1 : index
    %c0_7 = arith.constant 0 : index
    %6 = vector.load %arg5[%c1, %c0_7] : memref<3x32xf32, #tpu.memory_space<vmem>>, vector<1x32xf32>
    %7 = vector.shape_cast %6 : vector<1x32xf32> to vector<1x32xf32>
    %8 = vector.broadcast %7 : vector<1x32xf32> to vector<8x32xf32>
    %c2 = arith.constant 2 : index
    %c0_8 = arith.constant 0 : index
    %9 = vector.load %arg5[%c2, %c0_8] : memref<3x32xf32, #tpu.memory_space<vmem>>, vector<1x4xf32>
    %10 = vector.shape_cast %9 : vector<1x4xf32> to vector<1x4xf32>
    %11 = vector.broadcast %10 : vector<1x4xf32> to vector<8x4xf32>
    %c0_i32 = arith.constant 0 : i32
    %c8_i32 = arith.constant 8 : i32
    %12 = arith.muli %c0_i32, %c8_i32 : i32
    %13 = tpu.assume_multiple %12, 8 : i32
    %14 = arith.index_cast %13 : i32 to index
    %c0_9 = arith.constant 0 : index
    %15 = vector.load %arg1[%14, %c0_9] : memref<8x16xf32, #tpu.memory_space<vmem>>, vector<8x16xf32>
    %cst = arith.constant dense<0.000000e+00> : vector<8x32xf32>
    %16 = tpu.matmul %15, %0, %cst {dimension_numbers = #tpu.dot_dimension_numbers<[1], [0], [0], [1], [0, 0, 1, 1], [], []>} : vector<8x16xf32>, vector<16x32xf32>, vector<8x32xf32> -> vector<8x32xf32>
    %17 = arith.addf %16, %5 : vector<8x32xf32>
    %cst_10 = arith.constant 0.000000e+00 : f32
    %18 = vector.broadcast %cst_10 : f32 to vector<8x32xf32>
    %19 = arith.maximumf %17, %18 : vector<8x32xf32>
    %cst_11 = arith.constant dense<0.000000e+00> : vector<8x32xf32>
    %20 = tpu.matmul %19, %1, %cst_11 {dimension_numbers = #tpu.dot_dimension_numbers<[1], [0], [0], [1], [0, 0, 1, 1], [], []>} : vector<8x32xf32>, vector<32x32xf32>, vector<8x32xf32> -> vector<8x32xf32>
    %21 = arith.addf %20, %8 : vector<8x32xf32>
    %cst_12 = arith.constant 0.000000e+00 : f32
    %22 = vector.broadcast %cst_12 : f32 to vector<8x32xf32>
    %23 = arith.maximumf %21, %22 : vector<8x32xf32>
    %cst_13 = arith.constant dense<0.000000e+00> : vector<8x4xf32>
    %24 = tpu.matmul %23, %2, %cst_13 {dimension_numbers = #tpu.dot_dimension_numbers<[1], [0], [0], [1], [0, 0, 1, 1], [], []>} : vector<8x32xf32>, vector<32x4xf32>, vector<8x4xf32> -> vector<8x4xf32>
    %25 = arith.addf %24, %11 : vector<8x4xf32>
    %26 = arith.index_cast %13 : i32 to index
    %c0_14 = arith.constant 0 : index
    %27 = vector.load %arg6[%26, %c0_14] : memref<8x4xf32, #tpu.memory_space<vmem>>, vector<8x4xf32>
    tpu.vector_store %arg6[%26, %c0_14], %25 {strides = array<i32>} : memref<8x4xf32, #tpu.memory_space<vmem>>, vector<8x4xf32>,
    %c1_i32 = arith.constant 1 : i32
    return
  }
  func.func @transform_0(%arg0: i32) -> (i32, i32) {
    %c0_i32 = arith.constant 0 : i32
    %c0_i32_0 = arith.constant 0 : i32
    return %arg0, %c0_i32 : i32, i32
  }
  func.func @transform_1(%arg0: i32) -> (i32, i32) {
    %c0_i32 = arith.constant 0 : i32
    %c0_i32_0 = arith.constant 0 : i32
    %c0_i32_1 = arith.constant 0 : i32
    return %c0_i32, %c0_i32_0 : i32, i32
  }
  func.func @transform_2(%arg0: i32) -> (i32, i32) {
    %c0_i32 = arith.constant 0 : i32
    %c0_i32_0 = arith.constant 0 : i32
    %c0_i32_1 = arith.constant 0 : i32
    return %c0_i32, %c0_i32_0 : i32, i32
  }
  func.func @transform_3(%arg0: i32) -> (i32, i32) {
    %c0_i32 = arith.constant 0 : i32
    %c0_i32_0 = arith.constant 0 : i32
    %c0_i32_1 = arith.constant 0 : i32
    return %c0_i32, %c0_i32_0 : i32, i32
  }
  func.func @transform_4(%arg0: i32) -> (i32, i32) {
    %c0_i32 = arith.constant 0 : i32
    %c0_i32_0 = arith.constant 0 : i32
    %c0_i32_1 = arith.constant 0 : i32
    return %c0_i32, %c0_i32_0 : i32, i32
  }
  func.func @transform_5(%arg0: i32) -> (i32, i32) {
    %c0_i32 = arith.constant 0 : i32
    %c0_i32_0 = arith.constant 0 : i32
    return %arg0, %c0_i32 : i32, i32
  }
}

</mosaic_0001>

<llo_original>
// kernel: qvaluemap_forward.1
$region0: #{qvaluemap_forward.1}
  #allocation0 [shape = 'u32[]', space=smem, size = 0x4, offset = 0x4, fixed_abs, tag = 'smem constant byte address 0x4 - core index']
  #allocation1 [shape = 'u32[72,128]{1,0:T(1,128)}', space=vmem, size = 0x9000, scoped, tag = 'internal scratch']
  %s0 = inlined_call_operand.hbm [shape: f32[8,16], index: 0, kind: input, shape index: {}]
  %s1 = inlined_call_operand.hbm [shape: f32[16,32], index: 1, kind: input, shape index: {}]
  %s2 = inlined_call_operand.vmem [shape: f32[32,32], index: 2, kind: input, shape index: {}]
  %s3 = inlined_call_operand.vmem [shape: f32[32,4], index: 3, kind: input, shape index: {}]
  %s4 = inlined_call_operand.vmem [shape: f32[3,32], index: 4, kind: input, shape index: {}]
  %s5 = inlined_call_operand.vmem [shape: f32[8,4], index: 5, kind: output, shape index: {}]
  %s6 = sld [smem:[#allocation0]]
  $region38: #{qvaluemap_forward.1} parent=0
    _
  %s8 = ssub.s32 1, %s6
  %s9 = scalar_select 0, %s8, %s6
  $region1: #{qvaluemap_forward.1} parent=0
    #allocation2 [shape = 'u8[4096]{0}', space=vmem, size = 0x1000, scoped, tag = 'input window, operand 0, single buffered']
    #allocation3 [shape = 's32[1]{0}', space=sflag, size = 0x4, scoped, tag = 'scoped memory for qvaluemap_forward.1']
    #allocation4 [shape = 'u8[8192]{0}', space=vmem, size = 0x2000, scoped, tag = 'input window, operand 1, single buffered']
    #allocation5 [shape = 's32[1]{0}', space=sflag, size = 0x4, scoped, tag = 'scoped memory for qvaluemap_forward.1']
    %10 = vsyncpa [#allocation3], 0
    %11 = vsyncpa [#allocation5], 0
    // Predicated region
    $region2: #{qvaluemap_forward.1} parent=1 // pred_check
      _
    $region3: #{qvaluemap_forward.1} parent=1 // pred_check_branch
      %13 = sbr.rel (0) target = $region5
    $region4: #{qvaluemap_forward.1} parent=1 // pred_region
      %15 = vsyncadd [#allocation3], 0
      %s17 = sshll.u32 %s0, 4
      %s18 = int_to_ptr.hbm [resolvable:$true] %s17
      %s19 = sshll.u32 [#allocation2], 4
      %s20 = int_to_ptr.vmem [resolvable:$true] %s19
      %22 = dma.hbm_to_vmem [thread:$0]  %s18, 128, %s20, [#allocation3]
    $region5: #{qvaluemap_forward.1} parent=1 // pred_fallthru
      _
    // Predicated region
    $region6: #{qvaluemap_forward.1} parent=1 // pred_check
      _
    $region7: #{qvaluemap_forward.1} parent=1 // pred_check_branch
      %24 = sbr.rel (0) target = $region9
    $region8: #{qvaluemap_forward.1} parent=1 // pred_region
      %26 = vsyncadd [#allocation5], 0
      %s27 = sshll.u32 %s1, 4
      %s28 = int_to_ptr.hbm [resolvable:$true] %s27
      %s29 = sshll.u32 [#allocation4], 4
      %s30 = int_to_ptr.vmem [resolvable:$true] %s29
      %35 = dma.hbm_to_vmem [thread:$0]  %s28, 256, %s30, [#allocation5], 128, 128, 8
    $region9: #{qvaluemap_forward.1} parent=1 // pred_fallthru
      _
    // Predicated region
    $region10: #{qvaluemap_forward.1} parent=1 // pred_check
      _
    $region11: #{qvaluemap_forward.1} parent=1 // pred_check_branch
      %37 = sbr.rel (0) target = $region13
    $region12: #{qvaluemap_forward.1} parent=1 // pred_region
      _
    $region13: #{qvaluemap_forward.1} parent=1 // pred_fallthru
      _
    // Predicated region
    $region14: #{qvaluemap_forward.1} parent=1 // pred_check
      _
    $region15: #{qvaluemap_forward.1} parent=1 // pred_check_branch
      %39 = sbr.rel (0) target = $region17
    $region16: #{qvaluemap_forward.1} parent=1 // pred_region
      _
    $region17: #{qvaluemap_forward.1} parent=1 // pred_fallthru
      _
    // Predicated region
    $region18: #{qvaluemap_forward.1} parent=1 // pred_check
      _
    $region19: #{qvaluemap_forward.1} parent=1 // pred_check_branch
      %41 = sbr.rel (0) target = $region21
    $region20: #{qvaluemap_forward.1} parent=1 // pred_region
      _
    $region21: #{qvaluemap_forward.1} parent=1 // pred_fallthru
      _
    // Predicated region
    $region22: #{qvaluemap_forward.1} parent=1 // pred_check
      _
    $region23: #{qvaluemap_forward.1} parent=1 // pred_check_branch
      %43 = sbr.rel (0) target = $region25
    $region24: #{qvaluemap_forward.1} parent=1 // pred_region
      %45 = dma.done [#allocation3], 128
    $region25: #{qvaluemap_forward.1} parent=1 // pred_fallthru
      _
    // Predicated region
    $region26: #{qvaluemap_forward.1} parent=1 // pred_check
      _
    $region27: #{qvaluemap_forward.1} parent=1 // pred_check_branch
      %47 = sbr.rel (0) target = $region29
    $region28: #{qvaluemap_forward.1} parent=1 // pred_region
      %49 = dma.done [#allocation5], 256
    $region29: #{qvaluemap_forward.1} parent=1 // pred_fallthru
      _
    %v50 = vld [vmem:[#allocation4] sm:$0xff]
    %v51 = vld [vmem:[#allocation4 + $0x8] sm:$0xff]
    %v52 = vld [vmem:[%s2] sm:$0xff]
    %v53 = vld [vmem:[%s2 + $0x8] sm:$0xff]
    %v54 = vld [vmem:[%s2 + $0x10] sm:$0xff]
    %v55 = vld [vmem:[%s2 + $0x18] sm:$0xff]
    %v56 = vld [vmem:[%s3] sm:$0xff]
    %v57 = vld [vmem:[%s3 + $0x8] sm:$0xff]
    %v58 = vld [vmem:[%s3 + $0x10] sm:$0xff]
    %v59 = vld [vmem:[%s3 + $0x18] sm:$0xff]
    %v60 = vld [vmem:[%s4] sm:$0x1]
    %v61 = vperm.slane %v60, 0
    %v62 = vld [vmem:[%s4 + $0x1] sm:$0x1]
    %v63 = vperm.slane %v62, 0
    %v64 = vld [vmem:[%s4 + $0x2] sm:$0x1]
    %v65 = vperm.slane %v64, 0
    %v66 = vld [vmem:[#allocation2] sm:$0xff]
    %vm67 = vcmask 130048
    %v69 = vsel %vm67, %v66, 0
    %71 = vmatpush.msra.mxu0 0.0
    %72 = vmatpush.msra.mxu0 0.0
    %73 = vmatpush.msra.mxu0 0.0
    %74 = vmatpush.msra.mxu0 0.0
    %75 = vmatpush.msra.mxu0 0.0
    %76 = vmatpush.msra.mxu0 0.0
    %77 = vmatpush.msra.mxu0 0.0
    %78 = vmatpush.msra.mxu0 0.0
    %79 = vmatpush.msra.mxu0 0.0
    %80 = vmatpush.msra.mxu0 0.0
    %81 = vmatpush.msra.mxu0 0.0
    %82 = vmatpush.msra.mxu0 0.0
    %83 = vmatpush.msra.mxu0 0.0
    %84 = vmatpush.msra.mxu0 0.0
    %85 = vmatpush.msra.mxu0 %v51
    %86 = vmatpush.msra.mxu0 %v50
    %87 = vmatmul.f32.gmra.mxu0 %v69
    %v88 = vpop.f32.mrf.mxu0
    %v89 = vadd.f32 %v61, %v88
    %90 = vdwg.mxu0
    %v91 = vmax.f32 %v89, 0.0
    %vm92 = vcmask 261120
    %v94 = vsel %vm92, %v91, 0
    %96 = vmatpush.msra.mxu0 0.0
    %97 = vmatpush.msra.mxu0 0.0
    %98 = vmatpush.msra.mxu0 0.0
    %99 = vmatpush.msra.mxu0 0.0
    %100 = vmatpush.msra.mxu0 0.0
    %101 = vmatpush.msra.mxu0 0.0
    %102 = vmatpush.msra.mxu0 0.0
    %103 = vmatpush.msra.mxu0 0.0
    %104 = vmatpush.msra.mxu0 0.0
    %105 = vmatpush.msra.mxu0 0.0
    %106 = vmatpush.msra.mxu0 0.0
    %107 = vmatpush.msra.mxu0 0.0
    %108 = vmatpush.msra.mxu0 %v55
    %109 = vmatpush.msra.mxu0 %v54
    %110 = vmatpush.msra.mxu0 %v53
    %111 = vmatpush.msra.mxu0 %v52
    %112 = vmatmul.f32.gmra.mxu0 %v94
    %v113 = vpop.f32.mrf.mxu0
    %v114 = vadd.f32 %v63, %v113
    %115 = vdwg.mxu0
    %v116 = vmax.f32 %v114, 0.0
    %v118 = vsel %vm92, %v116, 0
    %120 = vmatpush.msra.mxu0 0.0
    %121 = vmatpush.msra.mxu0 0.0
    %122 = vmatpush.msra.mxu0 0.0
    %123 = vmatpush.msra.mxu0 0.0
    %124 = vmatpush.msra.mxu0 0.0
    %125 = vmatpush.msra.mxu0 0.0
    %126 = vmatpush.msra.mxu0 0.0
    %127 = vmatpush.msra.mxu0 0.0
    %128 = vmatpush.msra.mxu0 0.0
    %129 = vmatpush.msra.mxu0 0.0
    %130 = vmatpush.msra.mxu0 0.0
    %131 = vmatpush.msra.mxu0 0.0
    %132 = vmatpush.msra.mxu0 %v59
    %133 = vmatpush.msra.mxu0 %v58
    %134 = vmatpush.msra.mxu0 %v57
    %135 = vmatpush.msra.mxu0 %v56
    %136 = vmatmul.f32.gmra.mxu0 %v118
    %v137 = vpop.f32.mrf.mxu0
    %v138 = vadd.f32 %v65, %v137
    %139 = vdwg.mxu0
    %vm140 = vcmask 31744
    %141 = vst.msk [vmem:[%s5] sm:$0xff] %vm140, %v138
    // Predicated region
    $region30: #{qvaluemap_forward.1} parent=1 // pred_check
      _
    $region31: #{qvaluemap_forward.1} parent=1 // pred_check_branch
      %143 = sbr.rel (0) target = $region33
    $region32: #{qvaluemap_forward.1} parent=1 // pred_region
      _
    $region33: #{qvaluemap_forward.1} parent=1 // pred_fallthru
      _
    // Predicated region
    $region34: #{qvaluemap_forward.1} parent=1 // pred_check
      _
    $region35: #{qvaluemap_forward.1} parent=1 // pred_check_branch
      %145 = sbr.rel (0) target = $region37
    $region36: #{qvaluemap_forward.1} parent=1 // pred_region
      _
    $region37: #{qvaluemap_forward.1} parent=1 // pred_fallthru
      _
    %146 = vsyncpa [#allocation3], 1
    %147 = vsyncpa [#allocation5], 1

</llo_original>
